<compile_context>
chip_gen: v7x
topology: tpu7x:2x2x1
jax: 0.10.0
libtpu: 0.0.40
codegen_flags: <defaults>
</compile_context>

<pallas_src>
import functools
import math

import jax
import jax.numpy as jnp
from jax.experimental import pallas as pl
from jax.experimental.pallas import tpu as pltpu


# ----------------------------- Pallas kernel ------------------------------ #
def _actor_critic_kernel(obs_ref, noise_ref, slab_ref, out_ref, *, S, H, A, A1P):
    """Fused actor+critic forward, batch-in-lanes.

    obs_ref:   [S, Bblk]       noise_ref: [A, Bblk]
    slab_ref:  [Rpad, C]       packed weights/biases/std/const (see pack_params)
    out_ref:   [A + 2, Bblk]   rows = action(0..A-1) | log_prob(A) | v(A+1)
    """
    H2 = 2 * H
    A1 = A + 1
    rb = 2 * H2 + A1P                       # bias/constant block start row
    cdt = slab_ref.dtype                    # compute dtype for MXU operands

    # Static slices into the packed slab (free; all 16-row aligned sections).
    w1 = slab_ref[pl.ds(0, H2), pl.ds(0, S)]          # [2H, S]   [a_w1 ; c_w1]^T
    w2 = slab_ref[pl.ds(H2, H2), pl.ds(0, H2)]        # [2H, 2H]  blkdiag(a_w2, c_w2)^T
    w3 = slab_ref[pl.ds(2 * H2, A1), pl.ds(0, H2)]    # [A+1, 2H]
    b1 = slab_ref[pl.ds(rb, H2), pl.ds(0, 1)].astype(jnp.float32)   # [2H, 1]
    b2 = slab_ref[pl.ds(rb, H2), pl.ds(1, 1)].astype(jnp.float32)   # [2H, 1]
    b3 = slab_ref[pl.ds(rb, A1), pl.ds(2, 1)].astype(jnp.float32)   # [A+1, 1]
    std = slab_ref[pl.ds(rb, A), pl.ds(3, 1)].astype(jnp.float32)   # [A, 1]
    log_c = slab_ref[pl.ds(rb, 1), pl.ds(4, 1)].astype(jnp.float32)  # [1, 1]

    x = obs_ref[...].astype(cdt)                      # [S, B]
    noise = noise_ref[...]                            # [A, B] (always f32)

    # Fused actor|critic MLP: relu -> relu -> (tanh | identity).  All matmuls
    # produce lane-dense [*, B] results with f32 accumulation.
    h = jnp.maximum(jnp.dot(w1, x, preferred_element_type=jnp.float32) + b1, 0.0)
    h = jnp.maximum(jnp.dot(w2, h.astype(cdt), preferred_element_type=jnp.float32) + b2, 0.0)
    y = jnp.dot(w3, h.astype(cdt), preferred_element_type=jnp.float32) + b3    # [A+1, B]

    a = jnp.tanh(y[:A, :])                            # actor head  [A, B]
    v = y[A:A1, :]                                    # critic head [1, B]

    # Normal(a, std): reparameterized sample with supplied N(0,1) noise.
    action = a + std * noise                          # dist.sample()

    # log_prob summed over action dim: z == noise exactly, only noise^2 remains.
    logp = log_c - 0.5 * jnp.sum(noise * noise, axis=0, keepdims=True)   # [1, B]

    # Lane-dense stores (static sublane slices) into the single packed output.
    out_ref[pl.ds(0, A), :] = action
    out_ref[pl.ds(A, 1), :] = logp
    out_ref[pl.ds(A + 1, 1), :] = v


# ------------------------------- wrapper ---------------------------------- #
def _device_kind():
    try:
        return jax.devices()[0].device_kind.lower()
    except Exception:  # pragma: no cover
        return ""


def _default_batch_blocks(batch):
    """Gridless on single-TC parts (v5e/v6e); 2 blocks (one per TC) on v7x.

    Also caps per-block batch columns so blocks stay well inside scoped VMEM
    (guards v7x's 64 MiB physical / 32 MiB default scoped budget).
    """
    kind = _device_kind()
    blocks = 2 if (("v7" in kind or "7x" in kind) and batch >= 256) else 1
    max_cols_per_block = 1 << 16           # ~13 MiB of double-buffered blocks @ f32
    blocks = max(blocks, -(-batch // max_cols_per_block))
    return blocks


def actor_critic_forward(obs, noise, slab, *, state_size, action_size,
                         hidden_size, num_batch_blocks=None):
    """ActorCriticNet forward.

    obs:   [B, S] f32      noise: [B, A] f32 (standard-normal draws for sample())
    slab:  packed parameter slab from pack_params()
    Returns (action, log_prob, zeros, v) mirroring the PyTorch module.
    """
    B, S = obs.shape
    assert S == state_size
    A, H = action_size, hidden_size
    A1 = A + 1
    A1P = A1 + ((-A1) % 16)                # 16-row aligned W3 section

    if num_batch_blocks is None:
        num_batch_blocks = _default_batch_blocks(B)
    blk = max(1, int(num_batch_blocks))

    # Pad batch so every block is a multiple of 128 lanes (lane-dense stores,
    # and handles B not divisible by the block count without a VMEM blow-up).
    LANE = 128
    B_pad = -(-B // (blk * LANE)) * (blk * LANE)
    if B_pad != B:
        obs = jnp.pad(obs, ((0, B_pad - B), (0, 0)))
        noise = jnp.pad(noise, ((0, B_pad - B), (0, 0)))

    # Batch-in-lanes layout.
    obs_t = obs.T                          # [S, B_pad]
    noise_t = noise.T                      # [A, B_pad]

    kernel = functools.partial(_actor_critic_kernel, S=S, H=H, A=A, A1P=A1P)
    out_shape = jax.ShapeDtypeStruct((A + 2, B_pad), jnp.float32)
    R, C = slab.shape

    if blk == 1:
        # Single-TC parts (v5e/v6e): one gridless call, everything in VMEM.
        out_t = pl.pallas_call(kernel, out_shape=out_shape)(obs_t, noise_t, slab)
    else:
        # Batch grid: one step per TensorCore on v7x (or VMEM-guard tiling).
        tile_b = B_pad // blk
        grid_spec = pltpu.PrefetchScalarGridSpec(
            num_scalar_prefetch=0,
            grid=(blk,),
            in_specs=[
                pl.BlockSpec((S, tile_b), lambda i: (0, i)),
                pl.BlockSpec((A, tile_b), lambda i: (0, i)),
                pl.BlockSpec((R, C), lambda i: (0, 0)),     # weights VMEM-resident
            ],
            out_specs=pl.BlockSpec((A + 2, tile_b), lambda i: (0, i)),
        )
        out_t = pl.pallas_call(
            kernel,
            out_shape=out_shape,
            grid_spec=grid_spec,
            compiler_params=pltpu.CompilerParams(
                dimension_semantics=("parallel",)),
        )(obs_t, noise_t, slab)

    action = out_t[:A, :B].T
    log_prob = out_t[A:A + 1, :B].T
    v = out_t[A + 1:A + 2, :B].T
    # TODO(synk): PyTorch returns the zeros/entropy placeholder as float64
    # (np.zeros default); JAX default config has no f64, so it is f32 here.
    zeros = jnp.zeros((B, 1), dtype=jnp.float32)
    # TODO(synk): the PyTorch `action is not None` branch (log_prob of a
    # user-supplied action) is not implemented; this kernel covers sampling.
    return action, log_prob, zeros, v


# ------------------------- parameter init & packing ------------------------ #
def init_params(key, state_size, action_size, hidden_size):
    """PyTorch-default Linear init (uniform +-1/sqrt(fan_in)), weights [in, out]."""
    def linear_init(k, fan_in, fan_out):
        kw, kb = jax.random.split(k)
        bound = 1.0 / math.sqrt(fan_in)
        w = jax.random.uniform(kw, (fan_in, fan_out), jnp.float32, -bound, bound)
        b = jax.random.uniform(kb, (fan_out,), jnp.float32, -bound, bound)
        return w, b

    keys = jax.random.split(key, 6)
    a_w1, a_b1 = linear_init(keys[0], state_size, hidden_size)
    a_w2, a_b2 = linear_init(keys[1], hidden_size, hidden_size)
    a_w3, a_b3 = linear_init(keys[2], hidden_size, action_size)
    c_w1, c_b1 = linear_init(keys[3], state_size, hidden_size)
    c_w2, c_b2 = linear_init(keys[4], hidden_size, hidden_size)
    c_w3, c_b3 = linear_init(keys[5], hidden_size, 1)

    return {
        "a_w1": a_w1, "a_b1": a_b1, "a_w2": a_w2, "a_b2": a_b2,
        "a_w3": a_w3, "a_b3": a_b3,
        "c_w1": c_w1, "c_b1": c_b1, "c_w2": c_w2, "c_b2": c_b2,
        "c_w3": c_w3, "c_b3": c_b3,
        "std": jnp.ones((1, action_size), jnp.float32),   # nn.Parameter(ones)
    }


def pack_params(params, state_size, action_size, hidden_size,
                param_dtype=jnp.float32):
    """Pack all parameters into one [Rpad, C] slab, weights stored [out, in].

    Row layout (every section starts on a 16-row boundary):
      [0      , 2H)        : W1 = [a_w1 ; c_w1]^T          ([2H, S] in cols 0..S-1)
      [2H     , 4H)        : W2 = blkdiag(a_w2, c_w2)^T    ([2H, 2H])
      [4H     , 4H+A1P)    : W3  rows 0..A-1 = a_w3^T (cols 0..H-1),
                                 row  A      = c_w3^T (cols H..2H-1)
      [4H+A1P , 4H+A1P+2H) : column 0 = b1, 1 = b2, 2 = b3, 3 = std,
                             4 = log_c at row offset 0
    log_c = -sum(log std) - A/2*log(2*pi).  NOTE: re-run pack_params if std
    (a trainable parameter) is updated, or the kernel uses stale std/log_c.
    Use param_dtype=jnp.bfloat16 on v6e/v7x to halve weight DMA bytes (f32
    accumulation in-kernel keeps accuracy); keep f32 on v5e.
    """
    S, A, H = state_size, action_size, hidden_size
    H2, A1 = 2 * H, A + 1
    A1P = A1 + ((-A1) % 16)
    assert H2 % 8 == 0, "packing assumes hidden layout aligned to 8 sublanes"
    C = max(H2, S, 8)
    rb = 2 * H2 + A1P
    R = rb + H2
    R_pad = R + ((-R) % 16)

    slab = jnp.zeros((R_pad, C), jnp.float32)
    # W1
    w1 = jnp.concatenate([params["a_w1"], params["c_w1"]], axis=1).T      # [2H, S]
    slab = slab.at[0:H2, 0:S].set(w1)
    # W2 (block-diagonal, transposed to [out, in])
    slab = slab.at[H2:H2 + H, 0:H].set(params["a_w2"].T)
    slab = slab.at[H2 + H:2 * H2, H:H2].set(params["c_w2"].T)
    # W3 ([A+1, 2H])
    slab = slab.at[2 * H2:2 * H2 + A, 0:H].set(params["a_w3"].T)
    slab = slab.at[2 * H2 + A:2 * H2 + A1, H:H2].set(params["c_w3"].T)
    # bias / std / const columns
    b1 = jnp.concatenate([params["a_b1"], params["c_b1"]])                # [2H]
    b2 = jnp.concatenate([params["a_b2"], params["c_b2"]])                # [2H]
    slab = slab.at[rb:rb + H2, 0].set(b1)
    slab = slab.at[rb:rb + H2, 1].set(b2)
    slab = slab.at[rb:rb + A, 2].set(params["a_b3"])
    slab = slab.at[rb + A, 2].set(params["c_b3"][0])
    slab = slab.at[rb:rb + A, 3].set(params["std"][0])
    log_c = -jnp.sum(jnp.log(params["std"])) - 0.5 * A * math.log(2.0 * math.pi)
    slab = slab.at[rb, 4].set(log_c)
    return slab.astype(param_dtype)


# --------------------------- pure-JAX reference ---------------------------- #
def reference_forward(obs, params, noise):
    def fc(x, w1, b1, w2, b2, w3, b3, gate):
        x = jax.nn.relu(jnp.dot(x, w1, precision="highest") + b1)
        x = jax.nn.relu(jnp.dot(x, w2, precision="highest") + b2)
        return gate(jnp.dot(x, w3, precision="highest") + b3)

    a = fc(obs, params["a_w1"], params["a_b1"], params["a_w2"], params["a_b2"],
           params["a_w3"], params["a_b3"], jnp.tanh)
    v = fc(obs, params["c_w1"], params["c_b1"], params["c_w2"], params["c_b2"],
           params["c_w3"], params["c_b3"], lambda t: t)
    std = params["std"]
    action = a + std * noise
    lp = -0.5 * ((action - a) / std) ** 2 - jnp.log(std) - 0.5 * math.log(2.0 * math.pi)
    lp = jnp.sum(lp, axis=1, keepdims=True)
    return action, lp, v


# ----------------------------------- main ---------------------------------- #
if __name__ == "__main__":
    STATE_SIZE, ACTION_SIZE, HIDDEN_SIZE, BATCH = 16, 4, 32, 8

    root = jax.random.PRNGKey(0)
    k_params, k_obs, k_noise, k_obs2, k_noise2 = jax.random.split(root, 5)

    params = init_params(k_params, STATE_SIZE, ACTION_SIZE, HIDDEN_SIZE)
    slab = pack_params(params, STATE_SIZE, ACTION_SIZE, HIDDEN_SIZE)

    obs = jax.random.normal(k_obs, (BATCH, STATE_SIZE), jnp.float32)
    noise = jax.random.normal(k_noise, (BATCH, ACTION_SIZE), jnp.float32)

    # --- small batch: single gridless call ---
    action, log_prob, entropy_zeros, v = actor_critic_forward(
        obs, noise, slab,
        state_size=STATE_SIZE, action_size=ACTION_SIZE, hidden_size=HIDDEN_SIZE)
    jax.block_until_ready((action, log_prob, entropy_zeros, v))

    assert action.shape == (BATCH, ACTION_SIZE)
    assert log_prob.shape == (BATCH, 1)
    assert entropy_zeros.shape == (BATCH, 1)
    assert v.shape == (BATCH, 1)

    ra, rlp, rv = reference_forward(obs, params, noise)
    assert bool(jnp.allclose(action, ra, atol=1e-2, rtol=1e-2))
    assert bool(jnp.allclose(log_prob, rlp, atol=1e-2, rtol=1e-2))
    assert bool(jnp.allclose(v, rv, atol=1e-2, rtol=1e-2))

    # --- large rollout batch: auto grid (gridless on v5e/v6e, 2 blocks on v7x) ---
    B2 = 1024
    obs2 = jax.random.normal(k_obs2, (B2, STATE_SIZE), jnp.float32)
    noise2 = jax.random.normal(k_noise2, (B2, ACTION_SIZE), jnp.float32)
    ra2, rlp2, rv2 = reference_forward(obs2, params, noise2)

    a2, lp2, z2, v2 = actor_critic_forward(
        obs2, noise2, slab,
        state_size=STATE_SIZE, action_size=ACTION_SIZE, hidden_size=HIDDEN_SIZE)
    jax.block_until_ready((a2, lp2, z2, v2))
    assert a2.shape == (B2, ACTION_SIZE) and lp2.shape == (B2, 1) and v2.shape == (B2, 1)
    assert bool(jnp.allclose(a2, ra2, atol=1e-2, rtol=1e-2))
    assert bool(jnp.allclose(lp2, rlp2, atol=1e-2, rtol=1e-2))
    assert bool(jnp.allclose(v2, rv2, atol=1e-2, rtol=1e-2))

    # --- explicit 2-block batch grid (one step per TC on v7x; sequential but
    #     correct on single-TC parts) to exercise the tiled/megacore path ---
    a3, lp3, z3, v3 = actor_critic_forward(
        obs2, noise2, slab,
        state_size=STATE_SIZE, action_size=ACTION_SIZE, hidden_size=HIDDEN_SIZE,
        num_batch_blocks=2)
    jax.block_until_ready((a3, lp3, z3, v3))
    assert bool(jnp.allclose(a3, ra2, atol=1e-2, rtol=1e-2))
    assert bool(jnp.allclose(lp3, rlp2, atol=1e-2, rtol=1e-2))
    assert bool(jnp.allclose(v3, rv2, atol=1e-2, rtol=1e-2))

    # --- bf16 weight slab (v6e/v7x polish): bf16 MXU operands, f32 accumulate ---
    kind = _device_kind()
    if any(tag in kind for tag in ("v6", "v7", "7x")):
        slab_bf16 = pack_params(params, STATE_SIZE, ACTION_SIZE, HIDDEN_SIZE,
                                param_dtype=jnp.bfloat16)
        a4, lp4, _, v4 = actor_critic_forward(
            obs2, noise2, slab_bf16,
            state_size=STATE_SIZE, action_size=ACTION_SIZE, hidden_size=HIDDEN_SIZE)
        jax.block_until_ready((a4, lp4, v4))
        assert bool(jnp.allclose(a4, ra2, atol=5e-2, rtol=5e-2))
        assert bool(jnp.allclose(lp4, rlp2, atol=5e-2, rtol=5e-2))
        assert bool(jnp.allclose(v4, rv2, atol=5e-2, rtol=5e-2))

    print("KERNEL_OK")
</pallas_src>

<mosaic_0001>
module attributes {stable_mosaic.version = 11 : i64} {
  func.func @_actor_critic_kernel(%arg0: memref<16x128xf32, #tpu.memory_space<vmem>>, %arg1: memref<4x128xf32, #tpu.memory_space<vmem>>, %arg2: memref<208x64xf32, #tpu.memory_space<vmem>>, %arg3: memref<6x128xf32, #tpu.memory_space<vmem>>) attributes {dimension_semantics = [], scalar_prefetch = 0 : i64, scratch_operands = 0 : i64, tpu.core_type = #tpu.core_type<tc>} {
    %c0 = arith.constant 0 : index
    %c0_0 = arith.constant 0 : index
    %0 = vector.load %arg2[%c0, %c0_0] : memref<208x64xf32, #tpu.memory_space<vmem>>, vector<64x16xf32>
    %c64 = arith.constant 64 : index
    %c0_1 = arith.constant 0 : index
    %1 = vector.load %arg2[%c64, %c0_1] : memref<208x64xf32, #tpu.memory_space<vmem>>, vector<64x64xf32>
    %c128 = arith.constant 128 : index
    %c0_2 = arith.constant 0 : index
    %2 = vector.load %arg2[%c128, %c0_2] : memref<208x64xf32, #tpu.memory_space<vmem>>, vector<5x64xf32>
    %c144 = arith.constant 144 : index
    %c0_3 = arith.constant 0 : index
    %3 = vector.load %arg2[%c144, %c0_3] : memref<208x64xf32, #tpu.memory_space<vmem>>, vector<64x1xf32>
    %c144_4 = arith.constant 144 : index
    %c1 = arith.constant 1 : index
    %4 = vector.load %arg2[%c144_4, %c1] : memref<208x64xf32, #tpu.memory_space<vmem>>, vector<64x1xf32>
    %c144_5 = arith.constant 144 : index
    %c2 = arith.constant 2 : index
    %5 = vector.load %arg2[%c144_5, %c2] : memref<208x64xf32, #tpu.memory_space<vmem>>, vector<5x1xf32>
    %c144_6 = arith.constant 144 : index
    %c3 = arith.constant 3 : index
    %6 = vector.load %arg2[%c144_6, %c3] : memref<208x64xf32, #tpu.memory_space<vmem>>, vector<4x1xf32>
    %c144_7 = arith.constant 144 : index
    %c4 = arith.constant 4 : index
    %7 = vector.load %arg2[%c144_7, %c4] : memref<208x64xf32, #tpu.memory_space<vmem>>, vector<1x1xf32>
    %c0_8 = arith.constant 0 : index
    %c0_9 = arith.constant 0 : index
    %8 = vector.load %arg0[%c0_8, %c0_9] : memref<16x128xf32, #tpu.memory_space<vmem>>, vector<16x128xf32>
    %c0_10 = arith.constant 0 : index
    %c0_11 = arith.constant 0 : index
    %9 = vector.load %arg1[%c0_10, %c0_11] : memref<4x128xf32, #tpu.memory_space<vmem>>, vector<4x128xf32>
    %cst = arith.constant dense<0.000000e+00> : vector<64x128xf32>
    %10 = tpu.matmul %0, %8, %cst {dimension_numbers = #tpu.dot_dimension_numbers<[1], [0], [0], [1], [0, 0, 1, 1], [], []>} : vector<64x16xf32>, vector<16x128xf32>, vector<64x128xf32> -> vector<64x128xf32>
    %11 = vector.broadcast %3 : vector<64x1xf32> to vector<64x128xf32>
    %12 = arith.addf %10, %11 : vector<64x128xf32>
    %cst_12 = arith.constant 0.000000e+00 : f32
    %13 = vector.broadcast %cst_12 : f32 to vector<64x128xf32>
    %14 = arith.maximumf %12, %13 : vector<64x128xf32>
    %cst_13 = arith.constant dense<0.000000e+00> : vector<64x128xf32>
    %15 = tpu.matmul %1, %14, %cst_13 {dimension_numbers = #tpu.dot_dimension_numbers<[1], [0], [0], [1], [0, 0, 1, 1], [], []>} : vector<64x64xf32>, vector<64x128xf32>, vector<64x128xf32> -> vector<64x128xf32>
    %16 = vector.broadcast %4 : vector<64x1xf32> to vector<64x128xf32>
    %17 = arith.addf %15, %16 : vector<64x128xf32>
    %cst_14 = arith.constant 0.000000e+00 : f32
    %18 = vector.broadcast %cst_14 : f32 to vector<64x128xf32>
    %19 = arith.maximumf %17, %18 : vector<64x128xf32>
    %cst_15 = arith.constant dense<0.000000e+00> : vector<5x128xf32>
    %20 = tpu.matmul %2, %19, %cst_15 {dimension_numbers = #tpu.dot_dimension_numbers<[1], [0], [0], [1], [0, 0, 1, 1], [], []>} : vector<5x64xf32>, vector<64x128xf32>, vector<5x128xf32> -> vector<5x128xf32>
    %21 = vector.broadcast %5 : vector<5x1xf32> to vector<5x128xf32>
    %22 = arith.addf %20, %21 : vector<5x128xf32>
    %23 = vector.extract_strided_slice %22 {offsets = [0, 0], sizes = [4, 128], strides = [1, 1]} : vector<5x128xf32> to vector<4x128xf32>
    %24 = math.tanh %23 : vector<4x128xf32>
    %25 = vector.extract_strided_slice %22 {offsets = [4, 0], sizes = [1, 128], strides = [1, 1]} : vector<5x128xf32> to vector<1x128xf32>
    %26 = vector.broadcast %6 : vector<4x1xf32> to vector<4x128xf32>
    %27 = arith.mulf %26, %9 : vector<4x128xf32>
    %28 = arith.addf %24, %27 : vector<4x128xf32>
    %29 = arith.mulf %9, %9 : vector<4x128xf32>
    %cst_16 = arith.constant dense<0.000000e+00> : vector<128xf32>
    %30 = vector.multi_reduction <add>, %29, %cst_16 [0] : vector<4x128xf32> to vector<128xf32>
    %31 = vector.shape_cast %30 : vector<128xf32> to vector<1x128xf32>
    %cst_17 = arith.constant 5.000000e-01 : f32
    %32 = vector.broadcast %cst_17 : f32 to vector<1x128xf32>
    %33 = arith.mulf %32, %31 : vector<1x128xf32>
    %34 = vector.broadcast %7 : vector<1x1xf32> to vector<1x128xf32>
    %35 = arith.subf %34, %33 : vector<1x128xf32>
    %c0_18 = arith.constant 0 : index
    %c0_19 = arith.constant 0 : index
    %36 = vector.load %arg3[%c0_18, %c0_19] : memref<6x128xf32, #tpu.memory_space<vmem>>, vector<4x128xf32>
    tpu.vector_store %arg3[%c0_18, %c0_19], %28 {strides = array<i32>} : memref<6x128xf32, #tpu.memory_space<vmem>>, vector<4x128xf32>,
    %c4_20 = arith.constant 4 : index
    %c0_21 = arith.constant 0 : index
    %37 = vector.load %arg3[%c4_20, %c0_21] : memref<6x128xf32, #tpu.memory_space<vmem>>, vector<1x128xf32>
    tpu.vector_store %arg3[%c4_20, %c0_21], %35 {strides = array<i32>} : memref<6x128xf32, #tpu.memory_space<vmem>>, vector<1x128xf32>,
    %c5 = arith.constant 5 : index
    %c0_22 = arith.constant 0 : index
    %38 = vector.load %arg3[%c5, %c0_22] : memref<6x128xf32, #tpu.memory_space<vmem>>, vector<1x128xf32>
    tpu.vector_store %arg3[%c5, %c0_22], %25 {strides = array<i32>} : memref<6x128xf32, #tpu.memory_space<vmem>>, vector<1x128xf32>,
    return
  }
}

</mosaic_0001>

<llo_original>
// kernel: tpu_custom_call.1
$region0: #{tpu_custom_call.1}
  #allocation0 [shape = 'u32[]', space=smem, size = 0x4, offset = 0x4, fixed_abs, tag = 'smem constant byte address 0x4 - core index']
  #allocation1 [shape = 'u32[144,128]{1,0:T(1,128)}', space=vmem, size = 0x12000, scoped, tag = 'internal scratch']
  %s0 = inlined_call_operand.vmem [shape: f32[16,128], index: 0, kind: input, shape index: {}]
  %s1 = inlined_call_operand.vmem [shape: f32[4,128], index: 1, kind: input, shape index: {}]
  %s2 = inlined_call_operand.vmem [shape: f32[208,64], index: 2, kind: input, shape index: {}]
  %s3 = inlined_call_operand.hbm [shape: f32[6,128], index: 3, kind: output, shape index: {}]
  %s4 = sld [smem:[#allocation0]]
  $region22: #{tpu_custom_call.1} parent=0
    _
  %s6 = ssub.s32 1, %s4
  %s7 = scalar_select 0, %s6, %s4
  $region1: #{tpu_custom_call.1} parent=0
    #allocation2 [shape = 'u8[4096]{0}', space=vmem, size = 0x1000, scoped, tag = 'output window, operand 0, single buffered']
    #allocation3 [shape = 's32[1]{0}', space=sflag, size = 0x4, scoped, tag = 'scoped memory for tpu_custom_call.1']
    %8 = vsyncpa [#allocation3], 0
    // Predicated region
    $region2: #{tpu_custom_call.1} parent=1 // pred_check
      _
    $region3: #{tpu_custom_call.1} parent=1 // pred_check_branch
      %10 = sbr.rel (0) target = $region5
    $region4: #{tpu_custom_call.1} parent=1 // pred_region
      _
    $region5: #{tpu_custom_call.1} parent=1 // pred_fallthru
      _
    // Predicated region
    $region6: #{tpu_custom_call.1} parent=1 // pred_check
      _
    $region7: #{tpu_custom_call.1} parent=1 // pred_check_branch
      %12 = sbr.rel (0) target = $region9
    $region8: #{tpu_custom_call.1} parent=1 // pred_region
      _
    $region9: #{tpu_custom_call.1} parent=1 // pred_fallthru
      _
    // Predicated region
    $region10: #{tpu_custom_call.1} parent=1 // pred_check
      _
    $region11: #{tpu_custom_call.1} parent=1 // pred_check_branch
      %14 = sbr.rel (0) target = $region13
    $region12: #{tpu_custom_call.1} parent=1 // pred_region
      _
    $region13: #{tpu_custom_call.1} parent=1 // pred_fallthru
      _
    %v15 = vld [vmem:[%s2] sm:$0xff]
    %v16 = vld [vmem:[%s2 + $0x8] sm:$0xff]
    %v17 = vld [vmem:[%s2 + $0x10] sm:$0xff]
    %v18 = vld [vmem:[%s2 + $0x18] sm:$0xff]
    %v19 = vld [vmem:[%s2 + $0x20] sm:$0xff]
    %v20 = vld [vmem:[%s2 + $0x28] sm:$0xff]
    %v21 = vld [vmem:[%s2 + $0x30] sm:$0xff]
    %v22 = vld [vmem:[%s2 + $0x38] sm:$0xff]
    %v23 = vld [vmem:[%s2 + $0x40] sm:$0xff]
    %v24 = vld [vmem:[%s2 + $0x48] sm:$0xff]
    %v25 = vld [vmem:[%s2 + $0x50] sm:$0xff]
    %v26 = vld [vmem:[%s2 + $0x58] sm:$0xff]
    %v27 = vld [vmem:[%s2 + $0x60] sm:$0xff]
    %v28 = vld [vmem:[%s2 + $0x68] sm:$0xff]
    %v29 = vld [vmem:[%s2 + $0x70] sm:$0xff]
    %v30 = vld [vmem:[%s2 + $0x78] sm:$0xff]
    %v31 = vld [vmem:[%s2 + $0x80] sm:$0x1f]
    %v32 = vld [vmem:[%s2 + $0x90] sm:$0xff]
    %v33 = vld [vmem:[%s2 + $0x98] sm:$0xff]
    %v34 = vld [vmem:[%s2 + $0xa0] sm:$0xff]
    %v35 = vld [vmem:[%s2 + $0xa8] sm:$0xff]
    %v36 = vld [vmem:[%s2 + $0xb0] sm:$0xff]
    %v37 = vld [vmem:[%s2 + $0xb8] sm:$0xff]
    %v38 = vld [vmem:[%s2 + $0xc0] sm:$0xff]
    %v39 = vld [vmem:[%s2 + $0xc8] sm:$0xff]
    %v40 = vld [vmem:[%s2 + $0x90] sm:$0x1f]
    %v41 = vld [vmem:[%s2 + $0x90] sm:$0xf]
    %v42 = vld [vmem:[%s2 + $0x90] sm:$0x1]
    %v43 = vld [vmem:[%s0] sm:$0xff]
    %v44 = vld [vmem:[%s0 + $0x8] sm:$0xff]
    %v45 = vld [vmem:[%s1] sm:$0xf]
    %47 = vset.pattern.permute.xlu0 0
    %48 = vperm.xlu0 %47, %v32
    %v49 = vpop.permute.xlu0 %48
    %52 = vset.pattern.permute.xlu0 0
    %53 = vperm.xlu0 %52, %v33
    %v54 = vpop.permute.xlu0 %53
    %57 = vset.pattern.permute.xlu0 0
    %58 = vperm.xlu0 %57, %v34
    %v59 = vpop.permute.xlu0 %58
    %62 = vset.pattern.permute.xlu0 0
    %63 = vperm.xlu0 %62, %v35
    %v64 = vpop.permute.xlu0 %63
    %67 = vset.pattern.permute.xlu0 0
    %68 = vperm.xlu0 %67, %v36
    %v69 = vpop.permute.xlu0 %68
    %72 = vset.pattern.permute.xlu0 0
    %73 = vperm.xlu0 %72, %v37
    %v74 = vpop.permute.xlu0 %73
    %77 = vset.pattern.permute.xlu0 0
    %78 = vperm.xlu0 %77, %v38
    %v79 = vpop.permute.xlu0 %78
    %82 = vset.pattern.permute.xlu0 0
    %83 = vperm.xlu0 %82, %v39
    %v84 = vpop.permute.xlu0 %83
    %vm86 = vcmask 130048
    %v88 = vsel %vm86, %v15, 0
    %v91 = vsel %vm86, %v16, 0
    %v94 = vsel %vm86, %v17, 0
    %v97 = vsel %vm86, %v18, 0
    %v100 = vsel %vm86, %v19, 0
    %v103 = vsel %vm86, %v20, 0
    %v106 = vsel %vm86, %v21, 0
    %v109 = vsel %vm86, %v22, 0
    %111 = vmatprep.subr.mxu0 0.0
    %112 = vmatpush1.msra.mxu0 %v43
    %113 = vmatprep.subr.mxu0 0.0
    %114 = vmatpush1.msra.mxu0 %v44
    %115 = vmatprep.subr.mxu0 0.0
    %116 = vmatpush1.msra.mxu0 0.0
    %117 = vmatprep.subr.mxu0 0.0
    %118 = vmatpush1.msra.mxu0 0.0
    %119 = vmatprep.subr.mxu0 0.0
    %120 = vmatpush1.msra.mxu0 0.0
    %121 = vmatprep.subr.mxu0 0.0
    %122 = vmatpush1.msra.mxu0 0.0
    %123 = vmatprep.subr.mxu0 0.0
    %124 = vmatpush1.msra.mxu0 0.0
    %125 = vmatprep.subr.mxu0 0.0
    %126 = vmatpush1.msra.mxu0 0.0
    %127 = vmatprep.subr.mxu0 0.0
    %128 = vmatpush1.msra.mxu0 0.0
    %129 = vmatprep.subr.mxu0 0.0
    %130 = vmatpush1.msra.mxu0 0.0
    %131 = vmatprep.subr.mxu0 0.0
    %132 = vmatpush1.msra.mxu0 0.0
    %133 = vmatprep.subr.mxu0 0.0
    %134 = vmatpush1.msra.mxu0 0.0
    %135 = vmatprep.subr.mxu0 0.0
    %136 = vmatpush1.msra.mxu0 0.0
    %137 = vmatprep.subr.mxu0 0.0
    %138 = vmatpush1.msra.mxu0 0.0
    %139 = vmatprep.subr.mxu0 0.0
    %140 = vmatpush1.msra.mxu0 0.0
    %141 = vmatprep.subr.mxu0 0.0
    %142 = vmatpush1.msra.mxu0 0.0
    %143 = vmatprep.subr.mxu0 0.0
    %144 = vmatpush1.msra.mxu0 0.0
    %145 = vmatprep.subr.mxu0 0.0
    %146 = vmatpush1.msra.mxu0 0.0
    %147 = vmatprep.subr.mxu0 0.0
    %148 = vmatpush1.msra.mxu0 0.0
    %149 = vmatprep.subr.mxu0 0.0
    %150 = vmatpush1.msra.mxu0 0.0
    %151 = vmatprep.subr.mxu0 0.0
    %152 = vmatpush1.msra.mxu0 0.0
    %153 = vmatprep.subr.mxu0 0.0
    %154 = vmatpush1.msra.mxu0 0.0
    %155 = vmatprep.subr.mxu0 0.0
    %156 = vmatpush1.msra.mxu0 0.0
    %157 = vmatprep.subr.mxu0 0.0
    %158 = vmatpush1.msra.mxu0 0.0
    %159 = vmatprep.subr.mxu0 0.0
    %160 = vmatpush1.msra.mxu0 0.0
    %161 = vmatprep.subr.mxu0 0.0
    %162 = vmatpush1.msra.mxu0 0.0
    %163 = vmatprep.subr.mxu0 0.0
    %164 = vmatpush1.msra.mxu0 0.0
    %165 = vmatprep.subr.mxu0 0.0
    %166 = vmatpush1.msra.mxu0 0.0
    %167 = vmatprep.subr.mxu0 0.0
    %168 = vmatpush1.msra.mxu0 0.0
    %169 = vmatprep.subr.mxu0 0.0
    %170 = vmatpush1.msra.mxu0 0.0
    %171 = vmatprep.subr.mxu0 0.0
    %172 = vmatpush1.msra.mxu0 0.0
    %173 = vmatprep.subr.mxu0 0.0
    %174 = vmatpush1.msra.mxu0 0.0
    %175 = vmatprep.mubr.f32.mxu0 0.0
    %176 = vmatmul.mubr.f32.gmra.mrb[0].mxu0 %v88
    %v177 = vpop.f32.mrb[0].mxu0
    %v178 = vadd.f32 %v49, %v177
    %v179 = vpop.f32.mrb[0].mxu0
    %180 = vmatprep.mubr.f32.mxu0 0.0
    %181 = vmatmul.mubr.f32.gmra.mrb[0].mxu0 %v91
    %v182 = vpop.f32.mrb[0].mxu0
    %v183 = vadd.f32 %v54, %v182
    %v184 = vpop.f32.mrb[0].mxu0
    %185 = vmatprep.mubr.f32.mxu0 0.0
    %186 = vmatmul.mubr.f32.gmra.mrb[0].mxu0 %v94
    %v187 = vpop.f32.mrb[0].mxu0
    %v188 = vadd.f32 %v59, %v187
    %v189 = vpop.f32.mrb[0].mxu0
    %190 = vmatprep.mubr.f32.mxu0 0.0
    %191 = vmatmul.mubr.f32.gmra.mrb[0].mxu0 %v97
    %v192 = vpop.f32.mrb[0].mxu0
    %v193 = vadd.f32 %v64, %v192
    %v194 = vpop.f32.mrb[0].mxu0
    %195 = vmatprep.mubr.f32.mxu0 0.0
    %196 = vmatmul.mubr.f32.gmra.mrb[0].mxu0 %v100
    %v197 = vpop.f32.mrb[0].mxu0
    %v198 = vadd.f32 %v69, %v197
    %v199 = vpop.f32.mrb[0].mxu0
    %200 = vmatprep.mubr.f32.mxu0 0.0
    %201 = vmatmul.mubr.f32.gmra.mrb[0].mxu0 %v103
    %v202 = vpop.f32.mrb[0].mxu0
    %v203 = vadd.f32 %v74, %v202
    %v204 = vpop.f32.mrb[0].mxu0
    %205 = vmatprep.mubr.f32.mxu0 0.0
    %206 = vmatmul.mubr.f32.gmra.mrb[0].mxu0 %v106
    %v207 = vpop.f32.mrb[0].mxu0
    %v208 = vadd.f32 %v79, %v207
    %v209 = vpop.f32.mrb[0].mxu0
    %210 = vmatprep.mubr.f32.mxu0 0.0
    %211 = vmatmul.mubr.f32.gmra.mrb[0].mxu0 %v109
    %v212 = vpop.f32.mrb[0].mxu0
    %v213 = vadd.f32 %v84, %v212
    %v214 = vpop.f32.mrb[0].mxu0
    %215 = vdwg.mxu0
    %v216 = vmax.f32 %v178, 0.0
    %v217 = vmax.f32 %v183, 0.0
    %v218 = vmax.f32 %v188, 0.0
    %v219 = vmax.f32 %v193, 0.0
    %v220 = vmax.f32 %v198, 0.0
    %v221 = vmax.f32 %v203, 0.0
    %v222 = vmax.f32 %v208, 0.0
    %v223 = vmax.f32 %v213, 0.0
    %224 = vset.pattern.permute.xlu0 1
    %225 = vperm.xlu0 %224, %v32
    %v226 = vpop.permute.xlu0 %225
    %228 = vset.pattern.permute.xlu0 1
    %229 = vperm.xlu0 %228, %v33
    %v230 = vpop.permute.xlu0 %229
    %232 = vset.pattern.permute.xlu0 1
    %233 = vperm.xlu0 %232, %v34
    %v234 = vpop.permute.xlu0 %233
    %236 = vset.pattern.permute.xlu0 1
    %237 = vperm.xlu0 %236, %v35
    %v238 = vpop.permute.xlu0 %237
    %240 = vset.pattern.permute.xlu0 1
    %241 = vperm.xlu0 %240, %v36
    %v242 = vpop.permute.xlu0 %241
    %244 = vset.pattern.permute.xlu0 1
    %245 = vperm.xlu0 %244, %v37
    %v246 = vpop.permute.xlu0 %245
    %248 = vset.pattern.permute.xlu0 1
    %249 = vperm.xlu0 %248, %v38
    %v250 = vpop.permute.xlu0 %249
    %252 = vset.pattern.permute.xlu0 1
    %253 = vperm.xlu0 %252, %v39
    %v254 = vpop.permute.xlu0 %253
    %vm256 = vcmask 523264
    %v258 = vsel %vm256, %v23, 0
    %v261 = vsel %vm256, %v24, 0
    %v264 = vsel %vm256, %v25, 0
    %v267 = vsel %vm256, %v26, 0
    %v270 = vsel %vm256, %v27, 0
    %v273 = vsel %vm256, %v28, 0
    %v276 = vsel %vm256, %v29, 0
    %v279 = vsel %vm256, %v30, 0
    %281 = vmatprep.subr.mxu0 0.0
    %282 = vmatpush1.msra.mxu0 %v216
    %283 = vmatprep.subr.mxu0 0.0
    %284 = vmatpush1.msra.mxu0 %v217
    %285 = vmatprep.subr.mxu0 0.0
    %286 = vmatpush1.msra.mxu0 %v218
    %287 = vmatprep.subr.mxu0 0.0
    %288 = vmatpush1.msra.mxu0 %v219
    %289 = vmatprep.subr.mxu0 0.0
    %290 = vmatpush1.msra.mxu0 %v220
    %291 = vmatprep.subr.mxu0 0.0
    %292 = vmatpush1.msra.mxu0 %v221
    %293 = vmatprep.subr.mxu0 0.0
    %294 = vmatpush1.msra.mxu0 %v222
    %295 = vmatprep.subr.mxu0 0.0
    %296 = vmatpush1.msra.mxu0 %v223
    %297 = vmatprep.subr.mxu0 0.0
    %298 = vmatpush1.msra.mxu0 0.0
    %299 = vmatprep.subr.mxu0 0.0
    %300 = vmatpush1.msra.mxu0 0.0
    %301 = vmatprep.subr.mxu0 0.0
    %302 = vmatpush1.msra.mxu0 0.0
    %303 = vmatprep.subr.mxu0 0.0
    %304 = vmatpush1.msra.mxu0 0.0
    %305 = vmatprep.subr.mxu0 0.0
    %306 = vmatpush1.msra.mxu0 0.0
    %307 = vmatprep.subr.mxu0 0.0
    %308 = vmatpush1.msra.mxu0 0.0
    %309 = vmatprep.subr.mxu0 0.0
    %310 = vmatpush1.msra.mxu0 0.0
    %311 = vmatprep.subr.mxu0 0.0
    %312 = vmatpush1.msra.mxu0 0.0
    %313 = vmatprep.subr.mxu0 0.0
    %314 = vmatpush1.msra.mxu0 0.0
    %315 = vmatprep.subr.mxu0 0.0
    %316 = vmatpush1.msra.mxu0 0.0
    %317 = vmatprep.subr.mxu0 0.0
    %318 = vmatpush1.msra.mxu0 0.0
    %319 = vmatprep.subr.mxu0 0.0
    %320 = vmatpush1.msra.mxu0 0.0
    %321 = vmatprep.subr.mxu0 0.0
    %322 = vmatpush1.msra.mxu0 0.0
    %323 = vmatprep.subr.mxu0 0.0
    %324 = vmatpush1.msra.mxu0 0.0
    %325 = vmatprep.subr.mxu0 0.0
    %326 = vmatpush1.msra.mxu0 0.0
    %327 = vmatprep.subr.mxu0 0.0
    %328 = vmatpush1.msra.mxu0 0.0
    %329 = vmatprep.subr.mxu0 0.0
    %330 = vmatpush1.msra.mxu0 0.0
    %331 = vmatprep.subr.mxu0 0.0
    %332 = vmatpush1.msra.mxu0 0.0
    %333 = vmatprep.subr.mxu0 0.0
    %334 = vmatpush1.msra.mxu0 0.0
    %335 = vmatprep.subr.mxu0 0.0
    %336 = vmatpush1.msra.mxu0 0.0
    %337 = vmatprep.subr.mxu0 0.0
    %338 = vmatpush1.msra.mxu0 0.0
    %339 = vmatprep.subr.mxu0 0.0
    %340 = vmatpush1.msra.mxu0 0.0
    %341 = vmatprep.subr.mxu0 0.0
    %342 = vmatpush1.msra.mxu0 0.0
    %343 = vmatprep.subr.mxu0 0.0
    %344 = vmatpush1.msra.mxu0 0.0
    %345 = vmatprep.mubr.f32.mxu0 0.0
    %346 = vmatmul.mubr.f32.gmra.mrb[0].mxu0 %v258
    %v347 = vpop.f32.mrb[0].mxu0
    %v348 = vadd.f32 %v226, %v347
    %v349 = vpop.f32.mrb[0].mxu0
    %350 = vmatprep.mubr.f32.mxu0 0.0
    %351 = vmatmul.mubr.f32.gmra.mrb[0].mxu0 %v261
    %v352 = vpop.f32.mrb[0].mxu0
    %v353 = vadd.f32 %v230, %v352
    %v354 = vpop.f32.mrb[0].mxu0
    %355 = vmatprep.mubr.f32.mxu0 0.0
    %356 = vmatmul.mubr.f32.gmra.mrb[0].mxu0 %v264
    %v357 = vpop.f32.mrb[0].mxu0
    %v358 = vadd.f32 %v234, %v357
    %v359 = vpop.f32.mrb[0].mxu0
    %360 = vmatprep.mubr.f32.mxu0 0.0
    %361 = vmatmul.mubr.f32.gmra.mrb[0].mxu0 %v267
    %v362 = vpop.f32.mrb[0].mxu0
    %v363 = vadd.f32 %v238, %v362
    %v364 = vpop.f32.mrb[0].mxu0
    %365 = vmatprep.mubr.f32.mxu0 0.0
    %366 = vmatmul.mubr.f32.gmra.mrb[0].mxu0 %v270
    %v367 = vpop.f32.mrb[0].mxu0
    %v368 = vadd.f32 %v242, %v367
    %v369 = vpop.f32.mrb[0].mxu0
    %370 = vmatprep.mubr.f32.mxu0 0.0
    %371 = vmatmul.mubr.f32.gmra.mrb[0].mxu0 %v273
    %v372 = vpop.f32.mrb[0].mxu0
    %v373 = vadd.f32 %v246, %v372
    %v374 = vpop.f32.mrb[0].mxu0
    %375 = vmatprep.mubr.f32.mxu0 0.0
    %376 = vmatmul.mubr.f32.gmra.mrb[0].mxu0 %v276
    %v377 = vpop.f32.mrb[0].mxu0
    %v378 = vadd.f32 %v250, %v377
    %v379 = vpop.f32.mrb[0].mxu0
    %380 = vmatprep.mubr.f32.mxu0 0.0
    %381 = vmatmul.mubr.f32.gmra.mrb[0].mxu0 %v279
    %v382 = vpop.f32.mrb[0].mxu0
    %v383 = vadd.f32 %v254, %v382
    %v384 = vpop.f32.mrb[0].mxu0
    %385 = vdwg.mxu0
    %v386 = vmax.f32 %v348, 0.0
    %v387 = vmax.f32 %v353, 0.0
    %v388 = vmax.f32 %v358, 0.0
    %v389 = vmax.f32 %v363, 0.0
    %v390 = vmax.f32 %v368, 0.0
    %v391 = vmax.f32 %v373, 0.0
    %v392 = vmax.f32 %v378, 0.0
    %v393 = vmax.f32 %v383, 0.0
    %395 = vset.pattern.permute.xlu0 2
    %396 = vperm.xlu0 %395, %v40
    %v397 = vpop.permute.xlu0 %396
    %v400 = vsel %vm256, %v31, 0
    %402 = vmatprep.subr.mxu0 0.0
    %403 = vmatpush1.msra.mxu0 %v386
    %404 = vmatprep.subr.mxu0 0.0
    %405 = vmatpush1.msra.mxu0 %v387
    %406 = vmatprep.subr.mxu0 0.0
    %407 = vmatpush1.msra.mxu0 %v388
    %408 = vmatprep.subr.mxu0 0.0
    %409 = vmatpush1.msra.mxu0 %v389
    %410 = vmatprep.subr.mxu0 0.0
    %411 = vmatpush1.msra.mxu0 %v390
    %412 = vmatprep.subr.mxu0 0.0
    %413 = vmatpush1.msra.mxu0 %v391
    %414 = vmatprep.subr.mxu0 0.0
    %415 = vmatpush1.msra.mxu0 %v392
    %416 = vmatprep.subr.mxu0 0.0
    %417 = vmatpush1.msra.mxu0 %v393
    %418 = vmatprep.subr.mxu0 0.0
    %419 = vmatpush1.msra.mxu0 0.0
    %420 = vmatprep.subr.mxu0 0.0
    %421 = vmatpush1.msra.mxu0 0.0
    %422 = vmatprep.subr.mxu0 0.0
    %423 = vmatpush1.msra.mxu0 0.0
    %424 = vmatprep.subr.mxu0 0.0
    %425 = vmatpush1.msra.mxu0 0.0
    %426 = vmatprep.subr.mxu0 0.0
    %427 = vmatpush1.msra.mxu0 0.0
    %428 = vmatprep.subr.mxu0 0.0
    %429 = vmatpush1.msra.mxu0 0.0
    %430 = vmatprep.subr.mxu0 0.0
    %431 = vmatpush1.msra.mxu0 0.0
    %432 = vmatprep.subr.mxu0 0.0
    %433 = vmatpush1.msra.mxu0 0.0
    %434 = vmatprep.subr.mxu0 0.0
    %435 = vmatpush1.msra.mxu0 0.0
    %436 = vmatprep.subr.mxu0 0.0
    %437 = vmatpush1.msra.mxu0 0.0
    %438 = vmatprep.subr.mxu0 0.0
    %439 = vmatpush1.msra.mxu0 0.0
    %440 = vmatprep.subr.mxu0 0.0
    %441 = vmatpush1.msra.mxu0 0.0
    %442 = vmatprep.subr.mxu0 0.0
    %443 = vmatpush1.msra.mxu0 0.0
    %444 = vmatprep.subr.mxu0 0.0
    %445 = vmatpush1.msra.mxu0 0.0
    %446 = vmatprep.subr.mxu0 0.0
    %447 = vmatpush1.msra.mxu0 0.0
    %448 = vmatprep.subr.mxu0 0.0
    %449 = vmatpush1.msra.mxu0 0.0
    %450 = vmatprep.subr.mxu0 0.0
    %451 = vmatpush1.msra.mxu0 0.0
    %452 = vmatprep.subr.mxu0 0.0
    %453 = vmatpush1.msra.mxu0 0.0
    %454 = vmatprep.subr.mxu0 0.0
    %455 = vmatpush1.msra.mxu0 0.0
    %456 = vmatprep.subr.mxu0 0.0
    %457 = vmatpush1.msra.mxu0 0.0
    %458 = vmatprep.subr.mxu0 0.0
    %459 = vmatpush1.msra.mxu0 0.0
    %460 = vmatprep.subr.mxu0 0.0
    %461 = vmatpush1.msra.mxu0 0.0
    %462 = vmatprep.subr.mxu0 0.0
    %463 = vmatpush1.msra.mxu0 0.0
    %464 = vmatprep.subr.mxu0 0.0
    %465 = vmatpush1.msra.mxu0 0.0
    %466 = vmatprep.mubr.f32.mxu0 0.0
    %467 = vmatmul.mubr.f32.gmra.mrb[0].mxu0 %v400
    %v468 = vpop.f32.mrb[0].mxu0
    %v469 = vadd.f32 %v397, %v468
    %v470 = vpop.f32.mrb[0].mxu0
    %471 = vdwg.mxu0
    %v472 = vtanh.pop %v469
    %474 = vset.pattern.permute.xlu0 3
    %475 = vperm.xlu0 %474, %v41
    %v476 = vpop.permute.xlu0 %475
    %v478 = vmul.f32 %v476, %v45
    %v479 = vadd.f32 %v472, %v478
    %v480 = vmul.f32 %v45, %v45
    %vm481 = vcmask 1043456
    %v482 = vsel %vm481, %v480, 0.0
    %v483 = vrot.slane %v482, 4
    %v484 = vadd.f32 %v482, %v483
    %v485 = vrot.slane %v484, 2
    %v486 = vadd.f32 %v484, %v485
    %v487 = vrot.slane %v486, 1
    %v488 = vadd.f32 %v486, %v487
    %v489 = vmul.f32 %v488, 0.5
    %491 = vset.pattern.permute.xlu0 4
    %492 = vperm.xlu0 %491, %v42
    %v493 = vpop.permute.xlu0 %492
    %v495 = vsub.f32 %v493, %v489
    %496 = vst [vmem:[#allocation2] sm:$0xf] %v479
    %497 = vst [vmem:[#allocation2 + $0x4] sm:$0x1] %v495
    %498 = vst [vmem:[#allocation2 + $0x1] sm:$0x10] %v469
    // Predicated region
    $region14: #{tpu_custom_call.1} parent=1 // pred_check
      _
    $region15: #{tpu_custom_call.1} parent=1 // pred_check_branch
      %500 = sbr.rel (0) target = $region17
    $region16: #{tpu_custom_call.1} parent=1 // pred_region
      %s502 = ssub.s32 128, 128
      %503 = vsyncadd [#allocation3], %s502
      %s505 = sshll.u32 [#allocation2], 4
      %s506 = int_to_ptr.vmem [resolvable:$true] %s505
      %508 = dma.vmem_to_hbm [thread:$0]  %s506, 128, %s3, [#allocation3]
    $region17: #{tpu_custom_call.1} parent=1 // pred_fallthru
      _
    // Predicated region
    $region18: #{tpu_custom_call.1} parent=1 // pred_check
      _
    $region19: #{tpu_custom_call.1} parent=1 // pred_check_branch
      %510 = sbr.rel (0) target = $region21
    $region20: #{tpu_custom_call.1} parent=1 // pred_region
      %511 = dma.done [#allocation3], 128
    $region21: #{tpu_custom_call.1} parent=1 // pred_fallthru
      _
    %512 = vsyncpa [#allocation3], 1

</llo_original>
